<compile_context>
chip_gen: v6e
topology: v6e:2x2x1
jax: 0.10.0
libtpu: 0.0.40
codegen_flags: <defaults>
</compile_context>

<pallas_src>
import functools

import numpy as np

import jax
import jax.numpy as jnp
from jax.experimental import pallas as pl
from jax.experimental.pallas import tpu as pltpu

_CH = (8, 16, 32)        # encoder channel progression
_LANE = 128
_SUB = 8


def _conv_out(n):
    # 3x3 kernel, stride 2, VALID padding (PyTorch Conv2d defaults here).
    return (n - 3) // 2 + 1


def _round_up(v, m):
    return ((v + m - 1) // m) * m


def _padded_tile_bytes(rows, lanes, dtype_bytes=4):
    """f32 VMEM bytes of a (rows, lanes) tile after (8, 128) layout padding."""
    return _round_up(max(rows, 1), _SUB) * _round_up(max(lanes, 1), _LANE) * dtype_bytes


def torch_oihw_to_hwio(w_oihw):
    """Convert real PyTorch Conv2d weights (OIHW) to the HWIO layout expected
    by encoder_forward / _banded_weight."""
    return jnp.transpose(w_oihw, (2, 3, 1, 0))


def _banded_weight(w_hwio, w_in, w_out, n_pad=None):
    """Banded matmul RHS per kernel row kh.

    Returns (3, w_in*ci, n) with
      band[kh, w*ci + c, j*co + o] = w_hwio[kh, w - 2j, c, o]   if 0 <= w-2j < 3
                                   = 0                           otherwise
    so that for LHS[i, w*ci + c] = x[2i+kh, w, c]:
      sum_kh LHS_kh @ band[kh]  ==  stride-2 VALID 3x3 conv output,
    laid out as rows=i (output height), lanes=(j, co).
    """
    _, _, ci, co = w_hwio.shape
    kw_idx = np.arange(w_in)[:, None] - 2 * np.arange(w_out)[None, :]   # (w_in, w_out)
    valid = (kw_idx >= 0) & (kw_idx < 3)
    kw_safe = np.where(valid, kw_idx, 0)
    taps = w_hwio[:, kw_safe]                                # (3, w_in, w_out, ci, co)
    taps = jnp.where(valid[None, :, :, None, None], taps, 0.0)
    band = jnp.transpose(taps, (0, 1, 3, 2, 4)).reshape(3, w_in * ci, w_out * co)
    if n_pad is not None and n_pad > band.shape[-1]:
        band = jnp.pad(band, ((0, 0), (0, 0), (0, n_pad - band.shape[-1])))
    return band


def _bias_row(bias, w_out, n_pad=None):
    """Bias broadcast over the output width, laid out as lanes=(j, co)."""
    row = jnp.tile(bias, w_out).reshape(1, w_out * bias.shape[0])
    if n_pad is not None and n_pad > row.shape[1]:
        row = jnp.pad(row, ((0, 0), (0, n_pad - row.shape[1])))
    return row


def _choose_batch_block(n, cap, step_vmem_bytes, vmem_budget):
    """Largest NB <= cap fitting the VMEM budget.  Keeps G = ceil(N/NB) >= 2
    whenever N >= 2 so the "parallel" grid axis can feed both v7x TensorCores
    (the extra grid step costs ~0.35us on single-TC chips — negligible)."""
    nb = max(1, min(cap, n))
    if n >= 2:
        nb = min(nb, -(-n // 2))        # ceil(n/2)  ->  G >= 2
    while nb > 1 and step_vmem_bytes(nb) > vmem_budget:
        nb -= 1
    return nb


def _encoder_kernel(x_ref, w1_ref, b1_ref, w2_ref, b2_ref, w3_ref, b3_ref,
                    o_ref, act1_ref, act2_ref, *, nb, heights):
    """One grid step: run all three conv layers for NB images.

    Activations live as (rows = output height, lanes = width*channels); each
    layer is 3 accumulated matmuls (one per kernel row) against the banded
    weights, reading the previous activation with stride-2 sublane slices.
    """
    h0, h1, h2, h3 = heights

    def rows(ref, start, count):
        # stride-2 sublane read of `count` rows starting at `start`.
        if count > 1:
            return ref[pl.ds(start, count, stride=2), :]
        return ref[pl.ds(start, 1), :]

    def conv_layer(src_ref, src_row0, h_out, wb_ref, bias_ref):
        # Three kh matmuls chained into ONE f32 accumulator (lets the MXU
        # result path accumulate on v7x instead of separate VPU passes).
        acc = jnp.dot(rows(src_ref, src_row0 + 0, h_out), wb_ref[0],
                      preferred_element_type=jnp.float32)
        acc += jnp.dot(rows(src_ref, src_row0 + 1, h_out), wb_ref[1],
                       preferred_element_type=jnp.float32)
        acc += jnp.dot(rows(src_ref, src_row0 + 2, h_out), wb_ref[2],
                       preferred_element_type=jnp.float32)
        return acc + bias_ref[...]

    # Static per-image loop: after the restructure each iteration is only
    # 9 dots + 3 stores, so unrolling NB <= 8 stays tiny.  For very large NB
    # this would become a lax.fori_loop with dynamic row starts.
    for b in range(nb):
        act1_ref[...] = conv_layer(x_ref, b * h0, h1, w1_ref, b1_ref)
        act2_ref[...] = conv_layer(act1_ref, 0, h2, w2_ref, b2_ref)
        out_b = conv_layer(act2_ref, 0, h3, w3_ref, b3_ref)
        o_ref[pl.ds(b * h3, h3), :] = out_b.astype(o_ref.dtype)


def encoder_forward(x_nchw, params, batch_block_cap=8):
    """Forward pass matching torch Encoder: three 3x3 / stride-2 VALID convs.

    `params` is [(w1, b1), (w2, b2), (w3, b3)] with HWIO weights (3,3,Cin,Cout).
    Real PyTorch Conv2d weights (OIHW) must go through torch_oihw_to_hwio first.
    """
    (wt1, bs1), (wt2, bs2), (wt3, bs3) = params
    N, Cin, H, W = x_nchw.shape
    H1, W1 = _conv_out(H), _conv_out(W)
    H2, W2 = _conv_out(H1), _conv_out(W1)
    H3, W3 = _conv_out(H2), _conv_out(W2)
    c1, c2, c3 = _CH

    n1, n2, n3 = W1 * c1, W2 * c2, W3 * c3
    n3p = _round_up(n3, _LANE)          # lane-dense final store (unmasked vst)

    # Banded matmul weights + broadcast bias rows (built once, pure XLA).
    wb1 = _banded_weight(wt1, W, W1)
    wb2 = _banded_weight(wt2, W1, W2)
    wb3 = _banded_weight(wt3, W2, W3, n_pad=n3p)
    br1 = _bias_row(bs1, W1)
    br2 = _bias_row(bs2, W2)
    br3 = _bias_row(bs3, W3, n_pad=n3p)

    weight_bytes = sum(
        (a.shape[0] if a.ndim == 3 else 1)
        * _padded_tile_bytes(a.shape[-2], a.shape[-1])
        for a in (wb1, br1, wb2, br2, wb3, br3))

    def step_vmem_bytes(nb):
        # Per-grid-step footprint with (8,128) layout padding; input/output and
        # weight blocks counted double-buffered.
        return (2 * _padded_tile_bytes(nb * H, W * Cin)        # input block
                + 2 * _padded_tile_bytes(nb * H3, n3p)         # output block
                + _padded_tile_bytes(H1, n1)                   # act1 scratch
                + _padded_tile_bytes(H2, n2)                   # act2 scratch
                + 2 * weight_bytes)                            # resident weights

    # Budget sized for v7x (64 MiB VMEM per TensorCore) with headroom.
    NB = _choose_batch_block(N, batch_block_cap, step_vmem_bytes,
                             vmem_budget=40 << 20)
    G = -(-N // NB)
    Np = G * NB
    if Np != N:                         # pad ragged batches (no NB=1 fallback)
        x_nchw = jnp.pad(x_nchw, ((0, Np - N), (0, 0), (0, 0), (0, 0)))

    # NCHW -> rows (b, h) x lanes (w, c), grouped into batch blocks.
    x_rows = jnp.transpose(x_nchw, (0, 2, 3, 1)).reshape(G, NB * H, W * Cin)

    kernel = functools.partial(_encoder_kernel, nb=NB,
                               heights=(H, H1, H2, H3))

    rep2 = lambda g: (0, 0)             # weights/biases stay resident
    rep3 = lambda g: (0, 0, 0)
    vmem_limit = int(min(64 << 20, max(2 * step_vmem_bytes(NB), 16 << 20)))

    out = pl.pallas_call(
        kernel,
        out_shape=jax.ShapeDtypeStruct((G, NB * H3, n3p), jnp.float32),
        grid=(G,),
        in_specs=[
            pl.BlockSpec((None, NB * H, W * Cin), lambda g: (g, 0, 0)),
            pl.BlockSpec(wb1.shape, rep3),
            pl.BlockSpec(br1.shape, rep2),
            pl.BlockSpec(wb2.shape, rep3),
            pl.BlockSpec(br2.shape, rep2),
            pl.BlockSpec(wb3.shape, rep3),
            pl.BlockSpec(br3.shape, rep2),
        ],
        out_specs=pl.BlockSpec((None, NB * H3, n3p), lambda g: (g, 0, 0)),
        scratch_shapes=[
            pltpu.VMEM((H1, n1), jnp.float32),   # per-image layer-1 activation
            pltpu.VMEM((H2, n2), jnp.float32),   # per-image layer-2 activation
        ],
        compiler_params=pltpu.CompilerParams(
            dimension_semantics=("parallel",),
            vmem_limit_bytes=vmem_limit),
    )(x_rows, wb1, br1, wb2, br2, wb3, br3)

    # rows (b, h3) x lanes (w3, c3) -> NCHW, dropping lane + batch padding.
    y = out.reshape(Np, H3, n3p)[:N, :, :n3].reshape(N, H3, W3, c3)
    return jnp.transpose(y, (0, 3, 1, 2))


def init_encoder_params(channels_in, key):
    """Deterministic init mimicking PyTorch Conv2d default (U(+-1/sqrt(fan_in))),
    stored in HWIO layout (3, 3, Cin, Cout)."""
    chans = [channels_in, 8, 16, 32]
    params = []
    for i in range(3):
        cin, cout = chans[i], chans[i + 1]
        key, kw_key, kb_key = jax.random.split(key, 3)
        fan_in = cin * 3 * 3
        bound = 1.0 / jnp.sqrt(jnp.float32(fan_in))
        w = jax.random.uniform(kw_key, (3, 3, cin, cout), jnp.float32, -bound, bound)
        b = jax.random.uniform(kb_key, (cout,), jnp.float32, -bound, bound)
        params.append((w, b))
    return params


def _reference_forward(x_nchw, params):
    out = x_nchw
    for w_hwio, b in params:
        out = jax.lax.conv_general_dilated(
            out, w_hwio, window_strides=(2, 2), padding="VALID",
            dimension_numbers=("NCHW", "HWIO", "NCHW"),
        ) + b.reshape(1, -1, 1, 1)
    return out


if __name__ == "__main__":
    key = jax.random.PRNGKey(0)
    key, xk = jax.random.split(key)

    # Small shapes: batch=2, channels_in=4, spatial 16 -> 7 -> 3 -> 1.
    x = jax.random.normal(xk, (2, 4, 16, 16), jnp.float32)
    params = init_encoder_params(channels_in=4, key=key)

    fwd = jax.jit(encoder_forward)
    y = jax.block_until_ready(fwd(x, params))
    assert y.shape == (2, 32, 1, 1), y.shape
    y_ref = _reference_forward(x, params)
    assert jnp.allclose(y, y_ref, rtol=1e-4, atol=1e-4), \
        float(jnp.max(jnp.abs(y - y_ref)))

    # Multi-step grid: batch 6 -> NB=3, G=2 (both v7x TensorCores get work).
    key, xk2 = jax.random.split(key)
    x2 = jax.random.normal(xk2, (6, 4, 16, 16), jnp.float32)
    y2 = jax.block_until_ready(fwd(x2, params))
    assert y2.shape == (6, 32, 1, 1), y2.shape
    y2_ref = _reference_forward(x2, params)
    assert jnp.allclose(y2, y2_ref, rtol=1e-4, atol=1e-4), \
        float(jnp.max(jnp.abs(y2 - y2_ref)))

    # Ragged / prime batch: N=5 gets padded to NB*G=6 instead of NB=1 fallback.
    key, xk3 = jax.random.split(key)
    x3 = jax.random.normal(xk3, (5, 4, 16, 16), jnp.float32)
    y3 = jax.block_until_ready(fwd(x3, params))
    assert y3.shape == (5, 32, 1, 1), y3.shape
    y3_ref = _reference_forward(x3, params)
    assert jnp.allclose(y3, y3_ref, rtol=1e-4, atol=1e-4), \
        float(jnp.max(jnp.abs(y3 - y3_ref)))

    print("KERNEL_OK")
</pallas_src>

<mosaic_0001>
module attributes {stable_mosaic.version = 11 : i64} {
  func.func @_encoder_kernel(%arg0: i32, %arg1: memref<1x16x64xf32, #tpu.memory_space<vmem>>, %arg2: memref<3x64x56xf32, #tpu.memory_space<vmem>>, %arg3: memref<1x56xf32, #tpu.memory_space<vmem>>, %arg4: memref<3x56x48xf32, #tpu.memory_space<vmem>>, %arg5: memref<1x48xf32, #tpu.memory_space<vmem>>, %arg6: memref<3x48x128xf32, #tpu.memory_space<vmem>>, %arg7: memref<1x128xf32, #tpu.memory_space<vmem>>, %arg8: memref<1x1x128xf32, #tpu.memory_space<vmem>>, %arg9: memref<7x56xf32, #tpu.memory_space<vmem>>, %arg10: memref<3x48xf32, #tpu.memory_space<vmem>>) attributes {dimension_semantics = [#tpu.dimension_semantics<parallel>], iteration_bounds = array<i64: 2>, scalar_prefetch = 0 : i64, scratch_operands = 2 : i64, tpu.core_type = #tpu.core_type<tc>, window_params = [{transform_indices = @transform_0, window_bounds = array<i64: 1, 16, 64>}, {pipeline_mode = #tpu.pipeline_mode<synchronous>, transform_indices = @transform_1, window_bounds = array<i64: 3, 64, 56>}, {pipeline_mode = #tpu.pipeline_mode<synchronous>, transform_indices = @transform_2, window_bounds = array<i64: 1, 56>}, {pipeline_mode = #tpu.pipeline_mode<synchronous>, transform_indices = @transform_3, window_bounds = array<i64: 3, 56, 48>}, {pipeline_mode = #tpu.pipeline_mode<synchronous>, transform_indices = @transform_4, window_bounds = array<i64: 1, 48>}, {pipeline_mode = #tpu.pipeline_mode<synchronous>, transform_indices = @transform_5, window_bounds = array<i64: 3, 48, 128>}, {pipeline_mode = #tpu.pipeline_mode<synchronous>, transform_indices = @transform_6, window_bounds = array<i64: 1, 128>}, {transform_indices = @transform_7, window_bounds = array<i64: 1, 1, 128>}]} {
    %c0 = arith.constant 0 : index
    %c0_0 = arith.constant 0 : index
    %c0_1 = arith.constant 0 : index
    %0 = tpu.strided_load %arg1[%c0, %c0_0, %c0_1] {strides = array<i32: 1, 2, 1>} : memref<1x16x64xf32, #tpu.memory_space<vmem>>, vector<1x7x64xf32>
    %1 = vector.shape_cast %0 : vector<1x7x64xf32> to vector<7x64xf32>
    %c0_2 = arith.constant 0 : index
    %c0_3 = arith.constant 0 : index
    %c0_4 = arith.constant 0 : index
    %2 = vector.load %arg2[%c0_2, %c0_3, %c0_4] : memref<3x64x56xf32, #tpu.memory_space<vmem>>, vector<1x64x56xf32>
    %3 = vector.shape_cast %2 : vector<1x64x56xf32> to vector<64x56xf32>
    %cst = arith.constant dense<0.000000e+00> : vector<7x56xf32>
    %4 = tpu.matmul %1, %3, %cst {dimension_numbers = #tpu.dot_dimension_numbers<[1], [0], [0], [1], [0, 0, 1, 1], [], []>} : vector<7x64xf32>, vector<64x56xf32>, vector<7x56xf32> -> vector<7x56xf32>
    %c0_5 = arith.constant 0 : index
    %c1 = arith.constant 1 : index
    %c0_6 = arith.constant 0 : index
    %5 = tpu.strided_load %arg1[%c0_5, %c1, %c0_6] {strides = array<i32: 1, 2, 1>} : memref<1x16x64xf32, #tpu.memory_space<vmem>>, vector<1x7x64xf32>
    %6 = vector.shape_cast %5 : vector<1x7x64xf32> to vector<7x64xf32>
    %c1_7 = arith.constant 1 : index
    %c0_8 = arith.constant 0 : index
    %c0_9 = arith.constant 0 : index
    %7 = vector.load %arg2[%c1_7, %c0_8, %c0_9] : memref<3x64x56xf32, #tpu.memory_space<vmem>>, vector<1x64x56xf32>
    %8 = vector.shape_cast %7 : vector<1x64x56xf32> to vector<64x56xf32>
    %cst_10 = arith.constant dense<0.000000e+00> : vector<7x56xf32>
    %9 = tpu.matmul %6, %8, %cst_10 {dimension_numbers = #tpu.dot_dimension_numbers<[1], [0], [0], [1], [0, 0, 1, 1], [], []>} : vector<7x64xf32>, vector<64x56xf32>, vector<7x56xf32> -> vector<7x56xf32>
    %10 = arith.addf %4, %9 : vector<7x56xf32>
    %c0_11 = arith.constant 0 : index
    %c2 = arith.constant 2 : index
    %c0_12 = arith.constant 0 : index
    %11 = tpu.strided_load %arg1[%c0_11, %c2, %c0_12] {strides = array<i32: 1, 2, 1>} : memref<1x16x64xf32, #tpu.memory_space<vmem>>, vector<1x7x64xf32>
    %12 = vector.shape_cast %11 : vector<1x7x64xf32> to vector<7x64xf32>
    %c2_13 = arith.constant 2 : index
    %c0_14 = arith.constant 0 : index
    %c0_15 = arith.constant 0 : index
    %13 = vector.load %arg2[%c2_13, %c0_14, %c0_15] : memref<3x64x56xf32, #tpu.memory_space<vmem>>, vector<1x64x56xf32>
    %14 = vector.shape_cast %13 : vector<1x64x56xf32> to vector<64x56xf32>
    %cst_16 = arith.constant dense<0.000000e+00> : vector<7x56xf32>
    %15 = tpu.matmul %12, %14, %cst_16 {dimension_numbers = #tpu.dot_dimension_numbers<[1], [0], [0], [1], [0, 0, 1, 1], [], []>} : vector<7x64xf32>, vector<64x56xf32>, vector<7x56xf32> -> vector<7x56xf32>
    %16 = arith.addf %10, %15 : vector<7x56xf32>
    %c0_17 = arith.constant 0 : index
    %c0_18 = arith.constant 0 : index
    %17 = vector.load %arg3[%c0_17, %c0_18] : memref<1x56xf32, #tpu.memory_space<vmem>>, vector<1x56xf32>
    %18 = vector.broadcast %17 : vector<1x56xf32> to vector<7x56xf32>
    %19 = arith.addf %16, %18 : vector<7x56xf32>
    %c0_19 = arith.constant 0 : index
    %c0_20 = arith.constant 0 : index
    %20 = vector.load %arg9[%c0_19, %c0_20] : memref<7x56xf32, #tpu.memory_space<vmem>>, vector<7x56xf32>
    tpu.vector_store %arg9[%c0_19, %c0_20], %19 {strides = array<i32>} : memref<7x56xf32, #tpu.memory_space<vmem>>, vector<7x56xf32>,
    %c0_21 = arith.constant 0 : index
    %c0_22 = arith.constant 0 : index
    %21 = tpu.strided_load %arg9[%c0_21, %c0_22] {strides = array<i32: 2, 1>} : memref<7x56xf32, #tpu.memory_space<vmem>>, vector<3x56xf32>
    %c0_23 = arith.constant 0 : index
    %c0_24 = arith.constant 0 : index
    %c0_25 = arith.constant 0 : index
    %22 = vector.load %arg4[%c0_23, %c0_24, %c0_25] : memref<3x56x48xf32, #tpu.memory_space<vmem>>, vector<1x56x48xf32>
    %23 = vector.shape_cast %22 : vector<1x56x48xf32> to vector<56x48xf32>
    %cst_26 = arith.constant dense<0.000000e+00> : vector<3x48xf32>
    %24 = tpu.matmul %21, %23, %cst_26 {dimension_numbers = #tpu.dot_dimension_numbers<[1], [0], [0], [1], [0, 0, 1, 1], [], []>} : vector<3x56xf32>, vector<56x48xf32>, vector<3x48xf32> -> vector<3x48xf32>
    %c1_27 = arith.constant 1 : index
    %c0_28 = arith.constant 0 : index
    %25 = tpu.strided_load %arg9[%c1_27, %c0_28] {strides = array<i32: 2, 1>} : memref<7x56xf32, #tpu.memory_space<vmem>>, vector<3x56xf32>
    %c1_29 = arith.constant 1 : index
    %c0_30 = arith.constant 0 : index
    %c0_31 = arith.constant 0 : index
    %26 = vector.load %arg4[%c1_29, %c0_30, %c0_31] : memref<3x56x48xf32, #tpu.memory_space<vmem>>, vector<1x56x48xf32>
    %27 = vector.shape_cast %26 : vector<1x56x48xf32> to vector<56x48xf32>
    %cst_32 = arith.constant dense<0.000000e+00> : vector<3x48xf32>
    %28 = tpu.matmul %25, %27, %cst_32 {dimension_numbers = #tpu.dot_dimension_numbers<[1], [0], [0], [1], [0, 0, 1, 1], [], []>} : vector<3x56xf32>, vector<56x48xf32>, vector<3x48xf32> -> vector<3x48xf32>
    %29 = arith.addf %24, %28 : vector<3x48xf32>
    %c2_33 = arith.constant 2 : index
    %c0_34 = arith.constant 0 : index
    %30 = tpu.strided_load %arg9[%c2_33, %c0_34] {strides = array<i32: 2, 1>} : memref<7x56xf32, #tpu.memory_space<vmem>>, vector<3x56xf32>
    %c2_35 = arith.constant 2 : index
    %c0_36 = arith.constant 0 : index
    %c0_37 = arith.constant 0 : index
    %31 = vector.load %arg4[%c2_35, %c0_36, %c0_37] : memref<3x56x48xf32, #tpu.memory_space<vmem>>, vector<1x56x48xf32>
    %32 = vector.shape_cast %31 : vector<1x56x48xf32> to vector<56x48xf32>
    %cst_38 = arith.constant dense<0.000000e+00> : vector<3x48xf32>
    %33 = tpu.matmul %30, %32, %cst_38 {dimension_numbers = #tpu.dot_dimension_numbers<[1], [0], [0], [1], [0, 0, 1, 1], [], []>} : vector<3x56xf32>, vector<56x48xf32>, vector<3x48xf32> -> vector<3x48xf32>
    %34 = arith.addf %29, %33 : vector<3x48xf32>
    %c0_39 = arith.constant 0 : index
    %c0_40 = arith.constant 0 : index
    %35 = vector.load %arg5[%c0_39, %c0_40] : memref<1x48xf32, #tpu.memory_space<vmem>>, vector<1x48xf32>
    %36 = vector.broadcast %35 : vector<1x48xf32> to vector<3x48xf32>
    %37 = arith.addf %34, %36 : vector<3x48xf32>
    %c0_41 = arith.constant 0 : index
    %c0_42 = arith.constant 0 : index
    %38 = vector.load %arg10[%c0_41, %c0_42] : memref<3x48xf32, #tpu.memory_space<vmem>>, vector<3x48xf32>
    tpu.vector_store %arg10[%c0_41, %c0_42], %37 {strides = array<i32>} : memref<3x48xf32, #tpu.memory_space<vmem>>, vector<3x48xf32>,
    %c0_43 = arith.constant 0 : index
    %c0_44 = arith.constant 0 : index
    %39 = vector.load %arg10[%c0_43, %c0_44] : memref<3x48xf32, #tpu.memory_space<vmem>>, vector<1x48xf32>
    %c0_45 = arith.constant 0 : index
    %c0_46 = arith.constant 0 : index
    %c0_47 = arith.constant 0 : index
    %40 = vector.load %arg6[%c0_45, %c0_46, %c0_47] : memref<3x48x128xf32, #tpu.memory_space<vmem>>, vector<1x48x128xf32>
    %41 = vector.shape_cast %40 : vector<1x48x128xf32> to vector<48x128xf32>
    %cst_48 = arith.constant dense<0.000000e+00> : vector<1x128xf32>
    %42 = tpu.matmul %39, %41, %cst_48 {dimension_numbers = #tpu.dot_dimension_numbers<[1], [0], [0], [1], [0, 0, 1, 1], [], []>} : vector<1x48xf32>, vector<48x128xf32>, vector<1x128xf32> -> vector<1x128xf32>
    %c1_49 = arith.constant 1 : index
    %c0_50 = arith.constant 0 : index
    %43 = vector.load %arg10[%c1_49, %c0_50] : memref<3x48xf32, #tpu.memory_space<vmem>>, vector<1x48xf32>
    %c1_51 = arith.constant 1 : index
    %c0_52 = arith.constant 0 : index
    %c0_53 = arith.constant 0 : index
    %44 = vector.load %arg6[%c1_51, %c0_52, %c0_53] : memref<3x48x128xf32, #tpu.memory_space<vmem>>, vector<1x48x128xf32>
    %45 = vector.shape_cast %44 : vector<1x48x128xf32> to vector<48x128xf32>
    %cst_54 = arith.constant dense<0.000000e+00> : vector<1x128xf32>
    %46 = tpu.matmul %43, %45, %cst_54 {dimension_numbers = #tpu.dot_dimension_numbers<[1], [0], [0], [1], [0, 0, 1, 1], [], []>} : vector<1x48xf32>, vector<48x128xf32>, vector<1x128xf32> -> vector<1x128xf32>
    %47 = arith.addf %42, %46 : vector<1x128xf32>
    %c2_55 = arith.constant 2 : index
    %c0_56 = arith.constant 0 : index
    %48 = vector.load %arg10[%c2_55, %c0_56] : memref<3x48xf32, #tpu.memory_space<vmem>>, vector<1x48xf32>
    %c2_57 = arith.constant 2 : index
    %c0_58 = arith.constant 0 : index
    %c0_59 = arith.constant 0 : index
    %49 = vector.load %arg6[%c2_57, %c0_58, %c0_59] : memref<3x48x128xf32, #tpu.memory_space<vmem>>, vector<1x48x128xf32>
    %50 = vector.shape_cast %49 : vector<1x48x128xf32> to vector<48x128xf32>
    %cst_60 = arith.constant dense<0.000000e+00> : vector<1x128xf32>
    %51 = tpu.matmul %48, %50, %cst_60 {dimension_numbers = #tpu.dot_dimension_numbers<[1], [0], [0], [1], [0, 0, 1, 1], [], []>} : vector<1x48xf32>, vector<48x128xf32>, vector<1x128xf32> -> vector<1x128xf32>
    %52 = arith.addf %47, %51 : vector<1x128xf32>
    %c0_61 = arith.constant 0 : index
    %c0_62 = arith.constant 0 : index
    %53 = vector.load %arg7[%c0_61, %c0_62] : memref<1x128xf32, #tpu.memory_space<vmem>>, vector<1x128xf32>
    %54 = arith.addf %52, %53 : vector<1x128xf32>
    %c0_63 = arith.constant 0 : index
    %c0_64 = arith.constant 0 : index
    %c0_65 = arith.constant 0 : index
    %55 = vector.load %arg8[%c0_63, %c0_64, %c0_65] : memref<1x1x128xf32, #tpu.memory_space<vmem>>, vector<1x1x128xf32>
    %56 = vector.shape_cast %55 : vector<1x1x128xf32> to vector<1x128xf32>
    %57 = vector.shape_cast %54 : vector<1x128xf32> to vector<1x1x128xf32>
    tpu.vector_store %arg8[%c0_63, %c0_64, %c0_65], %57 {strides = array<i32>} : memref<1x1x128xf32, #tpu.memory_space<vmem>>, vector<1x1x128xf32>,
    return
  }
  func.func @transform_0(%arg0: i32) -> (i32, i32, i32) {
    %c0_i32 = arith.constant 0 : i32
    %c0_i32_0 = arith.constant 0 : i32
    %c0_i32_1 = arith.constant 0 : i32
    return %arg0, %c0_i32, %c0_i32_0 : i32, i32, i32
  }
  func.func @transform_1(%arg0: i32) -> (i32, i32, i32) {
    %c0_i32 = arith.constant 0 : i32
    %c0_i32_0 = arith.constant 0 : i32
    %c0_i32_1 = arith.constant 0 : i32
    %c0_i32_2 = arith.constant 0 : i32
    return %c0_i32, %c0_i32_0, %c0_i32_1 : i32, i32, i32
  }
  func.func @transform_2(%arg0: i32) -> (i32, i32) {
    %c0_i32 = arith.constant 0 : i32
    %c0_i32_0 = arith.constant 0 : i32
    %c0_i32_1 = arith.constant 0 : i32
    return %c0_i32, %c0_i32_0 : i32, i32
  }
  func.func @transform_3(%arg0: i32) -> (i32, i32, i32) {
    %c0_i32 = arith.constant 0 : i32
    %c0_i32_0 = arith.constant 0 : i32
    %c0_i32_1 = arith.constant 0 : i32
    %c0_i32_2 = arith.constant 0 : i32
    return %c0_i32, %c0_i32_0, %c0_i32_1 : i32, i32, i32
  }
  func.func @transform_4(%arg0: i32) -> (i32, i32) {
    %c0_i32 = arith.constant 0 : i32
    %c0_i32_0 = arith.constant 0 : i32
    %c0_i32_1 = arith.constant 0 : i32
    return %c0_i32, %c0_i32_0 : i32, i32
  }
  func.func @transform_5(%arg0: i32) -> (i32, i32, i32) {
    %c0_i32 = arith.constant 0 : i32
    %c0_i32_0 = arith.constant 0 : i32
    %c0_i32_1 = arith.constant 0 : i32
    %c0_i32_2 = arith.constant 0 : i32
    return %c0_i32, %c0_i32_0, %c0_i32_1 : i32, i32, i32
  }
  func.func @transform_6(%arg0: i32) -> (i32, i32) {
    %c0_i32 = arith.constant 0 : i32
    %c0_i32_0 = arith.constant 0 : i32
    %c0_i32_1 = arith.constant 0 : i32
    return %c0_i32, %c0_i32_0 : i32, i32
  }
  func.func @transform_7(%arg0: i32) -> (i32, i32, i32) {
    %c0_i32 = arith.constant 0 : i32
    %c0_i32_0 = arith.constant 0 : i32
    %c0_i32_1 = arith.constant 0 : i32
    return %arg0, %c0_i32, %c0_i32_0 : i32, i32, i32
  }
}

</mosaic_0001>

<llo_original>
// kernel: tile.14
$region0: #{tile.14}
  #allocation0 [shape = 's32[1]{0}', space=sflag, size = 0x4, scoped, tag = 'scoped memory for tile.14']
  %s0 = inlined_call_operand.vmem [shape: f32[8], index: 0, kind: input, shape index: {}]
  %s1 = inlined_call_operand.vmem [shape: f32[7,8], index: 1, kind: output, shape index: {}]
  // Predicated region
  $region2: #{tile.14} parent=0 // pred_check
    _
  $region3: #{tile.14} parent=0 // pred_check_branch
    %3 = sbr.rel (0) target = $region5
  $region4: #{tile.14} parent=0 // pred_region
    _
  $region5: #{tile.14} parent=0 // pred_fallthru
    _
  %v4 = vld [vmem:[%s0] ss:$0 sm:$0xff]
  %5 = vst [vmem:[%s1] sm:$0xff] %v4

// kernel: tile.15
$region0: #{tile.15}
  %s0 = inlined_call_operand.vmem [shape: f32[7,8], index: 0, kind: input, shape index: {}]
  %s1 = inlined_call_operand.vmem [shape: f32[1,56], index: 1, kind: output, shape index: {}]
  $region1: #{tile.15} parent=0
    #allocation0 [shape = 'u8[4096]{0}', space=vmem, size = 0x1000, scoped, tag = 'scoped mem for output reshape']
    %v2 = vld [vmem:[%s0] sm:$0x1]
    %vm3 = vcmask 64512
    %4 = vst.msk [vmem:[#allocation0] sm:$0x1] %vm3, %v2
    %s5 = scalar_lea.vmem %s0, 6
    %v6 = vld [vmem:[%s5] sm:$0x1]
    %7 = vrot.lane.b32.xlu0 %v6, 48
    %v8 = vpop.permute.xlu0 %7
    %vm9 = vcmask 458112
    %10 = vst.msk [vmem:[#allocation0] sm:$0x1] %vm9, %v8
    %s11 = scalar_lea.vmem %s0, 5
    %v12 = vld [vmem:[%s11] sm:$0x1]
    %13 = vrot.lane.b32.xlu0 %v12, 40
    %v14 = vpop.permute.xlu0 %13
    %vm15 = vcmask 392512
    %16 = vst.msk [vmem:[#allocation0] sm:$0x1] %vm15, %v14
    %s17 = scalar_lea.vmem %s0, 4
    %v18 = vld [vmem:[%s17] sm:$0x1]
    %19 = vrot.lane.b32.xlu0 %v18, 32
    %v20 = vpop.permute.xlu0 %19
    %vm21 = vcmask 326912
    %22 = vst.msk [vmem:[#allocation0] sm:$0x1] %vm21, %v20
    %s23 = scalar_lea.vmem %s0, 3
    %v24 = vld [vmem:[%s23] sm:$0x1]
    %25 = vrot.lane.b32.xlu0 %v24, 24
    %v26 = vpop.permute.xlu0 %25
    %vm27 = vcmask 261312
    %28 = vst.msk [vmem:[#allocation0] sm:$0x1] %vm27, %v26
    %s29 = scalar_lea.vmem %s0, 2
    %v30 = vld [vmem:[%s29] sm:$0x1]
    %31 = vrot.lane.b32.xlu0 %v30, 16
    %v32 = vpop.permute.xlu0 %31
    %vm33 = vcmask 195712
    %34 = vst.msk [vmem:[#allocation0] sm:$0x1] %vm33, %v32
    %s35 = scalar_lea.vmem %s0, 1
    %v36 = vld [vmem:[%s35] sm:$0x1]
    %37 = vrot.lane.b32.xlu0 %v36, 8
    %v38 = vpop.permute.xlu0 %37
    %vm39 = vcmask 130112
    %40 = vst.msk [vmem:[#allocation0] sm:$0x1] %vm39, %v38
    %s42 = sshll.u32 1, 1
    %s43 = ssub.s32 %s42, 1
    %v45 = vld [vmem:[#allocation0] sm:%s43]
    %s46 = sshll.u32 1, 1
    %s47 = ssub.s32 %s46, 1
    %48 = vst [vmem:[%s1] sm:%s47] %v45

// kernel: tile.19
$region0: #{tile.19}
  #allocation0 [shape = 's32[1]{0}', space=sflag, size = 0x4, scoped, tag = 'scoped memory for tile.19']
  %s0 = inlined_call_operand.vmem [shape: f32[16], index: 0, kind: input, shape index: {}]
  %s1 = inlined_call_operand.vmem [shape: f32[3,16], index: 1, kind: output, shape index: {}]
  // Predicated region
  $region2: #{tile.19} parent=0 // pred_check
    _
  $region3: #{tile.19} parent=0 // pred_check_branch
    %3 = sbr.rel (0) target = $region5
  $region4: #{tile.19} parent=0 // pred_region
    _
  $region5: #{tile.19} parent=0 // pred_fallthru
    _
  %v4 = vld [vmem:[%s0] ss:$0 sm:$0xff]
  %5 = vst [vmem:[%s1] sm:$0xf] %v4

// kernel: tile.20
$region0: #{tile.20}
  %s0 = inlined_call_operand.vmem [shape: f32[3,16], index: 0, kind: input, shape index: {}]
  %s1 = inlined_call_operand.vmem [shape: f32[1,48], index: 1, kind: output, shape index: {}]
  $region1: #{tile.20} parent=0
    #allocation0 [shape = 'u8[4096]{0}', space=vmem, size = 0x1000, scoped, tag = 'scoped mem for output reshape']
    #allocation1 [shape = 'u8[4096]{0}', space=vmem, size = 0x1000, scoped, tag = 'scoped mem for input reshape']
    %s3 = sshll.u32 1, 4
    %s4 = ssub.s32 %s3, 1
    %v5 = vld [vmem:[%s0] sm:%s4]
    %6 = vst [vmem:[#allocation1] sm:%s4] %v5
    %v7 = vld [vmem:[#allocation1] sm:$0x1]
    %vm8 = vcmask 130048
    %9 = vst.msk [vmem:[#allocation0] sm:$0x1] %vm8, %v7
    %s10 = scalar_lea.vmem [#allocation1], 2
    %v11 = vld [vmem:[%s10] sm:$0x1]
    %12 = vrot.lane.b32.xlu0 %v11, 32
    %v13 = vpop.permute.xlu0 %12
    %vm14 = vcmask 392448
    %15 = vst.msk [vmem:[#allocation0] sm:$0x1] %vm14, %v13
    %s16 = scalar_lea.vmem [#allocation1], 1
    %v17 = vld [vmem:[%s16] sm:$0x1]
    %18 = vrot.lane.b32.xlu0 %v17, 16
    %v19 = vpop.permute.xlu0 %18
    %vm20 = vcmask 261248
    %21 = vst.msk [vmem:[#allocation0] sm:$0x1] %vm20, %v19
    %s23 = sshll.u32 1, 1
    %s24 = ssub.s32 %s23, 1
    %v26 = vld [vmem:[#allocation0] sm:%s24]
    %s27 = sshll.u32 1, 1
    %s28 = ssub.s32 %s27, 1
    %29 = vst [vmem:[%s1] sm:%s28] %v26

// kernel: encoder_forward.1
$region0: #{encoder_forward.1}
  #allocation0 [shape = 'u32[]', space=smem, size = 0x4, offset = 0x4, fixed_abs, tag = 'smem constant byte address 0x4 - core index']
  #allocation1 [shape = 'u32[144,128]{1,0:T(1,128)}', space=vmem, size = 0x12000, scoped, tag = 'internal scratch']
  #allocation2 [shape = 'f32[7,56]{1,0:T(8,128)}', space=vmem, size = 0x1000, scoped, tag = 'scratch operand']
  #allocation3 [shape = 'f32[3,48]{1,0:T(4,128)}', space=vmem, size = 0x800, scoped, tag = 'scratch operand']
  %s0 = inlined_call_operand.vmem [shape: f32[2,16,64], index: 0, kind: input, shape index: {}]
  %s1 = inlined_call_operand.vmem [shape: f32[3,64,56], index: 1, kind: input, shape index: {}]
  %s2 = inlined_call_operand.vmem [shape: f32[1,56], index: 2, kind: input, shape index: {}]
  %s3 = inlined_call_operand.vmem [shape: f32[3,56,48], index: 3, kind: input, shape index: {}]
  %s4 = inlined_call_operand.vmem [shape: f32[1,48], index: 4, kind: input, shape index: {}]
  %s5 = inlined_call_operand.vmem [shape: f32[3,48,128], index: 5, kind: input, shape index: {}]
  %s6 = inlined_call_operand.vmem [shape: f32[1,128], index: 6, kind: input, shape index: {}]
  %s7 = inlined_call_operand.vmem [shape: f32[2,1,128], index: 7, kind: output, shape index: {}]
  %s8 = sld [smem:[#allocation0]]
  $region61: #{encoder_forward.1} parent=0
    _
  %s10 = ssub.s32 1, %s8
  %s11 = scalar_select 0, %s10, %s8
  loop: start=0, step=1, limit=4
  $region2: #{encoder_forward.1} parent=0 // loop_pre_header
    _
  $region3: #{encoder_forward.1} parent=0 // loop_header
    %s13 = sphi 0, %s17
    %p14 = scmp.ge.s32.totalorder %s13, 4
    %s23 = sphi 0, %s25
    %s26 = sphi 0, %s23
    %s27 = sphi 0, %s26
    %s43 = sphi 0, %s27
    %s47 = sphi 0, %s47
    %s49 = sphi 0, %s47
    %s50 = sphi 0, %s49
    %s64 = sphi 0, %s50
    %s68 = sphi 0, %s68
    %s70 = sphi 0, %s68
    %s71 = sphi 0, %s70
    %s85 = sphi 0, %s71
    %s89 = sphi 0, %s89
    %s91 = sphi 0, %s89
    %s92 = sphi 0, %s91
    %s106 = sphi 0, %s92
    %s110 = sphi 0, %s110
    %s112 = sphi 0, %s110
    %s113 = sphi 0, %s112
    %s127 = sphi 0, %s113
    %s131 = sphi 0, %s131
    %s133 = sphi 0, %s131
    %s134 = sphi 0, %s133
    %s148 = sphi 0, %s134
    %s152 = sphi 0, %s152
    %s154 = sphi 0, %s152
    %s155 = sphi 0, %s154
    %s169 = sphi 0, %s155
    %s175 = sphi 0, %s177
    %s178 = sphi 0, %s175
    %s179 = sphi 0, %s178
    %s195 = sphi 0, %s179
  $region4: #{encoder_forward.1} parent=0 // loop_header_branch
    %16 = sbr.rel (%p14) target = $region8
  $region5: #{encoder_forward.1} parent=0 // loop_body
    %s18 = ssub.s32 %s13, 1
    %s19 = ssub.s32 %s13, 2
    %s20 = sadd.s32 %s13, 1
    %s21 = ssub.s32 %s13, %s20
    %p22 = scmp.eq.s32.totalorder %s21, 0
    %s24 = sadd.s32 %s23, 1
    %s25 = scalar_select %p22, %s23, %s24
    %p28 = pneg %p22
    %p29 = scmp.eq.s32.totalorder %s13, 1
    %p30 = por %p28, %p29
    %p31 = scmp.ne.s32.totalorder %s23, %s26
    %p32 = scmp.eq.s32.totalorder %s13, 0
    %p33 = por %p31, %p32
    %p34 = scmp.ne.s32.totalorder %s23, %s26
    %p35 = scmp.eq.s32.totalorder %s18, 1
    %p36 = por %p34, %p35
    %p37 = scmp.ne.s32.totalorder %s26, %s27
    %p38 = scmp.eq.s32.totalorder %s18, 0
    %p39 = por %p37, %p38
    %p40 = scmp.ne.s32.totalorder %s26, %s27
    %p41 = scmp.eq.s32.totalorder %s19, 1
    %p42 = por %p40, %p41
    %p44 = scmp.ne.s32.totalorder %s27, %s43
    %p45 = scmp.eq.s32.totalorder %s19, 0
    %p46 = por %p44, %p45
    %s48 = sadd.s32 %s47, 1
    %p51 = scmp.eq.s32.totalorder %s13, 1
    %p52 = scmp.ne.s32.totalorder %s47, %s49
    %p53 = scmp.eq.s32.totalorder %s13, 0
    %p54 = por %p52, %p53
    %p55 = scmp.ne.s32.totalorder %s47, %s49
    %p56 = scmp.eq.s32.totalorder %s18, 1
    %p57 = por %p55, %p56
    %p58 = scmp.ne.s32.totalorder %s49, %s50
    %p59 = scmp.eq.s32.totalorder %s18, 0
    %p60 = por %p58, %p59
    %p61 = scmp.ne.s32.totalorder %s49, %s50
    %p62 = scmp.eq.s32.totalorder %s19, 1
    %p63 = por %p61, %p62
    %p65 = scmp.ne.s32.totalorder %s50, %s64
    %p66 = scmp.eq.s32.totalorder %s19, 0
    %p67 = por %p65, %p66
    %s69 = sadd.s32 %s68, 1
    %p72 = scmp.eq.s32.totalorder %s13, 1
    %p73 = scmp.ne.s32.totalorder %s68, %s70
    %p74 = scmp.eq.s32.totalorder %s13, 0
    %p75 = por %p73, %p74
    %p76 = scmp.ne.s32.totalorder %s68, %s70
    %p77 = scmp.eq.s32.totalorder %s18, 1
    %p78 = por %p76, %p77
    %p79 = scmp.ne.s32.totalorder %s70, %s71
    %p80 = scmp.eq.s32.totalorder %s18, 0
    %p81 = por %p79, %p80
    %p82 = scmp.ne.s32.totalorder %s70, %s71
    %p83 = scmp.eq.s32.totalorder %s19, 1
    %p84 = por %p82, %p83
    %p86 = scmp.ne.s32.totalorder %s71, %s85
    %p87 = scmp.eq.s32.totalorder %s19, 0
    %p88 = por %p86, %p87
    %s90 = sadd.s32 %s89, 1
    %p93 = scmp.eq.s32.totalorder %s13, 1
    %p94 = scmp.ne.s32.totalorder %s89, %s91
    %p95 = scmp.eq.s32.totalorder %s13, 0
    %p96 = por %p94, %p95
    %p97 = scmp.ne.s32.totalorder %s89, %s91
    %p98 = scmp.eq.s32.totalorder %s18, 1
    %p99 = por %p97, %p98
    %p100 = scmp.ne.s32.totalorder %s91, %s92
    %p101 = scmp.eq.s32.totalorder %s18, 0
    %p102 = por %p100, %p101
    %p103 = scmp.ne.s32.totalorder %s91, %s92
    %p104 = scmp.eq.s32.totalorder %s19, 1
    %p105 = por %p103, %p104
    %p107 = scmp.ne.s32.totalorder %s92, %s106
    %p108 = scmp.eq.s32.totalorder %s19, 0
    %p109 = por %p107, %p108
    %s111 = sadd.s32 %s110, 1
    %p114 = scmp.eq.s32.totalorder %s13, 1
    %p115 = scmp.ne.s32.totalorder %s110, %s112
    %p116 = scmp.eq.s32.totalorder %s13, 0
    %p117 = por %p115, %p116
    %p118 = scmp.ne.s32.totalorder %s110, %s112
    %p119 = scmp.eq.s32.totalorder %s18, 1
    %p120 = por %p118, %p119
    %p121 = scmp.ne.s32.totalorder %s112, %s113
    %p122 = scmp.eq.s32.totalorder %s18, 0
    %p123 = por %p121, %p122
    %p124 = scmp.ne.s32.totalorder %s112, %s113
    %p125 = scmp.eq.s32.totalorder %s19, 1
    %p126 = por %p124, %p125
    %p128 = scmp.ne.s32.totalorder %s113, %s127
    %p129 = scmp.eq.s32.totalorder %s19, 0
    %p130 = por %p128, %p129
    %s132 = sadd.s32 %s131, 1
    %p135 = scmp.eq.s32.totalorder %s13, 1
    %p136 = scmp.ne.s32.totalorder %s131, %s133
    %p137 = scmp.eq.s32.totalorder %s13, 0
    %p138 = por %p136, %p137
    %p139 = scmp.ne.s32.totalorder %s131, %s133
    %p140 = scmp.eq.s32.totalorder %s18, 1
    %p141 = por %p139, %p140
    %p142 = scmp.ne.s32.totalorder %s133, %s134
    %p143 = scmp.eq.s32.totalorder %s18, 0
    %p144 = por %p142, %p143
    %p145 = scmp.ne.s32.totalorder %s133, %s134
    %p146 = scmp.eq.s32.totalorder %s19, 1
    %p147 = por %p145, %p146
    %p149 = scmp.ne.s32.totalorder %s134, %s148
    %p150 = scmp.eq.s32.totalorder %s19, 0
    %p151 = por %p149, %p150
    %s153 = sadd.s32 %s152, 1
    %p156 = scmp.eq.s32.totalorder %s13, 1
    %p157 = scmp.ne.s32.totalorder %s152, %s154
    %p158 = scmp.eq.s32.totalorder %s13, 0
    %p159 = por %p157, %p158
    %p160 = scmp.ne.s32.totalorder %s152, %s154
    %p161 = scmp.eq.s32.totalorder %s18, 1
    %p162 = por %p160, %p161
    %p163 = scmp.ne.s32.totalorder %s154, %s155
    %p164 = scmp.eq.s32.totalorder %s18, 0
    %p165 = por %p163, %p164
    %p166 = scmp.ne.s32.totalorder %s154, %s155
    %p167 = scmp.eq.s32.totalorder %s19, 1
    %p168 = por %p166, %p167
    %p170 = scmp.ne.s32.totalorder %s155, %s169
    %p171 = scmp.eq.s32.totalorder %s19, 0
    %p172 = por %p170, %p171
    %s173 = ssub.s32 %s13, %s20
    %p174 = scmp.eq.s32.totalorder %s173, 0
    %s176 = sadd.s32 %s175, 1
    %s177 = scalar_select %p174, %s175, %s176
    %p180 = pneg %p174
    %p181 = scmp.eq.s32.totalorder %s13, 1
    %p182 = por %p180, %p181
    %p183 = scmp.ne.s32.totalorder %s175, %s178
    %p184 = scmp.eq.s32.totalorder %s13, 0
    %p185 = por %p183, %p184
    %p186 = scmp.ne.s32.totalorder %s175, %s178
    %p187 = scmp.eq.s32.totalorder %s18, 1
    %p188 = por %p186, %p187
    %p189 = scmp.ne.s32.totalorder %s178, %s179
    %p190 = scmp.eq.s32.totalorder %s18, 0
    %p191 = por %p189, %p190
    %p192 = scmp.ne.s32.totalorder %s178, %s179
    %p193 = scmp.eq.s32.totalorder %s19, 1
    %p194 = por %p192, %p193
    %p196 = scmp.ne.s32.totalorder %s179, %s195
    %p197 = scmp.eq.s32.totalorder %s19, 0
    %p198 = por %p196, %p197
    %p199 = scmp.le.s32.totalorder 1, %s13
    %p200 = scmp.lt.s32.totalorder %s13, 3
    %p201 = pnand %p199, %p200
    %p202 = pneg %p201
    // Predicated region
    $region9: #{encoder_forward.1} parent=5 // pred_check
      _
    $region10: #{encoder_forward.1} parent=5 // pred_check_branch
      %204 = sbr.rel (%p201) target = $region12
    $region11: #{encoder_forward.1} parent=5 // pred_region
      %s205 = ssub.s32 %s13, 1
      // Predicated region
      $region13: #{encoder_forward.1} parent=11 // pred_check
        %p206 = pneg %p60
      $region14: #{encoder_forward.1} parent=11 // pred_check_branch
        %208 = sbr.rel (%p206) target = $region16
      $region15: #{encoder_forward.1} parent=11 // pred_region
        _
      $region16: #{encoder_forward.1} parent=11 // pred_fallthru
        _
      // Predicated region
      $region17: #{encoder_forward.1} parent=11 // pred_check
        %p209 = pneg %p81
      $region18: #{encoder_forward.1} parent=11 // pred_check_branch
        %211 = sbr.rel (%p209) target = $region20
      $region19: #{encoder_forward.1} parent=11 // pred_region
        _
      $region20: #{encoder_forward.1} parent=11 // pred_fallthru
        _
      // Predicated region
      $region21: #{encoder_forward.1} parent=11 // pred_check
        %p212 = pneg %p102
      $region22: #{encoder_forward.1} parent=11 // pred_check_branch
        %214 = sbr.rel (%p212) target = $region24
      $region23: #{encoder_forward.1} parent=11 // pred_region
        _
      $region24: #{encoder_forward.1} parent=11 // pred_fallthru
        _
      // Predicated region
      $region25: #{encoder_forward.1} parent=11 // pred_check
        %p215 = pneg %p123
      $region26: #{encoder_forward.1} parent=11 // pred_check_branch
        %217 = sbr.rel (%p215) target = $region28
      $region27: #{encoder_forward.1} parent=11 // pred_region
        _
      $region28: #{encoder_forward.1} parent=11 // pred_fallthru
        _
      // Predicated region
      $region29: #{encoder_forward.1} parent=11 // pred_check
        %p218 = pneg %p144
      $region30: #{encoder_forward.1} parent=11 // pred_check_branch
        %220 = sbr.rel (%p218) target = $region32
      $region31: #{encoder_forward.1} parent=11 // pred_region
        _
      $region32: #{encoder_forward.1} parent=11 // pred_fallthru
        _
      // Predicated region
      $region33: #{encoder_forward.1} parent=11 // pred_check
        %p221 = pneg %p165
      $region34: #{encoder_forward.1} parent=11 // pred_check_branch
        %223 = sbr.rel (%p221) target = $region36
      $region35: #{encoder_forward.1} parent=11 // pred_region
        _
      $region36: #{encoder_forward.1} parent=11 // pred_fallthru
        _
    $region12: #{encoder_forward.1} parent=5 // pred_fallthru
      _
    %p224 = scmp.lt.s32.totalorder %s13, 2
    // Predicated region
    $region37: #{encoder_forward.1} parent=5 // pred_check
      %p225 = pneg %p224
    $region38: #{encoder_forward.1} parent=5 // pred_check_branch
      %227 = sbr.rel (%p225) target = $region40
    $region39: #{encoder_forward.1} parent=5 // pred_region
      // Predicated region
      $region41: #{encoder_forward.1} parent=39 // pred_check
        %p228 = pneg %p33
      $region42: #{encoder_forward.1} parent=39 // pred_check_branch
        %230 = sbr.rel (%p228) target = $region44
      $region43: #{encoder_forward.1} parent=39 // pred_region
        %p231 = scmp.lt.s32.totalorder %s13, 1
        %s232 = scalar_select %p231, %s13, 1
        %s233 = smul.addr %s232, 2
        %s234 = smul.addr %s233, 8
        %s235 = scalar_lea.vmem %s0, %s234
      $region44: #{encoder_forward.1} parent=39 // pred_fallthru
        _
    $region40: #{encoder_forward.1} parent=5 // pred_fallthru
      _
    %p236 = scmp.le.s32.totalorder 1, %s13
    %p237 = scmp.lt.s32.totalorder %s13, 3
    %p238 = pnand %p236, %p237
    %p239 = pneg %p238
    // Predicated region
    $region45: #{encoder_forward.1} parent=5 // pred_check
      _
    $region46: #{encoder_forward.1} parent=5 // pred_check_branch
      %241 = sbr.rel (%p238) target = $region48
    $region47: #{encoder_forward.1} parent=5 // pred_region
      %s242 = ssub.s32 %s13, 1
      %p243 = scmp.lt.s32.totalorder %s18, 1
      %s244 = scalar_select %p243, %s18, 1
      %s245 = smul.addr %s244, 2
      %s246 = smul.addr %s245, 8
      %s247 = scalar_lea.vmem %s0, %s246
      %p248 = pneg %p39
      %p249 = pneg %p36
      %p250 = pneg %p60
      %p251 = pneg %p57
      %p252 = pneg %p81
      %p253 = pneg %p78
      %p254 = pneg %p102
      %p255 = pneg %p99
      %p256 = pneg %p123
      %p257 = pneg %p120
      %p258 = pneg %p144
      %p259 = pneg %p141
      %p260 = pneg %p165
      %p261 = pneg %p162
      %p262 = pneg %p191
      %p263 = pneg %p188
      %p264 = scmp.lt.s32.totalorder %s18, 1
      %s265 = scalar_select %p264, %s18, 1
      %s266 = scalar_lea.vmem %s7, %s265
      %p267 = scmp.lt.s32.totalorder %s18, 1
      %s268 = scalar_select %p267, %s18, 1
      %s269 = smul.addr %s268, 2
      %s270 = smul.addr %s269, 8
      %s271 = scalar_lea.vmem %s0, %s270
      %p272 = scmp.lt.s32.totalorder %s18, 1
      %s273 = scalar_select %p272, %s18, 1
      %s274 = scalar_lea.vmem %s7, %s273
      %v275 = vld [vmem:[%s271] ss:$2 sm:$0x7f]
      %v276 = vld [vmem:[%s1] sm:$0xff]
      %v277 = vld [vmem:[%s1 + $0x8] sm:$0xff]
      %v278 = vld [vmem:[%s1 + $0x10] sm:$0xff]
      %v279 = vld [vmem:[%s1 + $0x18] sm:$0xff]
      %v280 = vld [vmem:[%s1 + $0x20] sm:$0xff]
      %v281 = vld [vmem:[%s1 + $0x28] sm:$0xff]
      %v282 = vld [vmem:[%s1 + $0x30] sm:$0xff]
      %v283 = vld [vmem:[%s1 + $0x38] sm:$0xff]
      %s284 = scalar_lea.vmem %s271, 1
      %v285 = vld [vmem:[%s284] ss:$2 sm:$0x7f]
      %s286 = scalar_lea.vmem %s1, 64
      %v287 = vld [vmem:[%s286] sm:$0xff]
      %v288 = vld [vmem:[%s286 + $0x8] sm:$0xff]
      %v289 = vld [vmem:[%s286 + $0x10] sm:$0xff]
      %v290 = vld [vmem:[%s286 + $0x18] sm:$0xff]
      %v291 = vld [vmem:[%s286 + $0x20] sm:$0xff]
      %v292 = vld [vmem:[%s286 + $0x28] sm:$0xff]
      %v293 = vld [vmem:[%s286 + $0x30] sm:$0xff]
      %v294 = vld [vmem:[%s286 + $0x38] sm:$0xff]
      %vm295 = vcmask 523264
      %v297 = vsel %vm295, %v285, 0
      %299 = vmatprep.subr.mxu0 0.0
      %300 = vmatpush1.msra.mxu0 0.0
      %301 = vmatprep.subr.mxu0 0.0
      %302 = vmatpush1.msra.mxu0 0.0
      %303 = vmatprep.subr.mxu0 0.0
      %304 = vmatpush1.msra.mxu0 0.0
      %305 = vmatprep.subr.mxu0 0.0
      %306 = vmatpush1.msra.mxu0 0.0
      %307 = vmatprep.subr.mxu0 0.0
      %308 = vmatpush1.msra.mxu0 0.0
      %309 = vmatprep.subr.mxu0 0.0
      %310 = vmatpush1.msra.mxu0 0.0
      %311 = vmatprep.subr.mxu0 0.0
      %312 = vmatpush1.msra.mxu0 0.0
      %313 = vmatprep.subr.mxu0 0.0
      %314 = vmatpush1.msra.mxu0 0.0
      %315 = vmatprep.subr.mxu0 0.0
      %316 = vmatpush1.msra.mxu0 %v294
      %317 = vmatprep.subr.mxu0 0.0
      %318 = vmatpush1.msra.mxu0 %v293
      %319 = vmatprep.subr.mxu0 0.0
      %320 = vmatpush1.msra.mxu0 %v292
      %321 = vmatprep.subr.mxu0 0.0
      %322 = vmatpush1.msra.mxu0 %v291
      %323 = vmatprep.subr.mxu0 0.0
      %324 = vmatpush1.msra.mxu0 %v290
      %325 = vmatprep.subr.mxu0 0.0
      %326 = vmatpush1.msra.mxu0 %v289
      %327 = vmatprep.subr.mxu0 0.0
      %328 = vmatpush1.msra.mxu0 %v288
      %329 = vmatprep.subr.mxu0 0.0
      %330 = vmatpush1.msra.mxu0 %v287
      %331 = vmatprep.subr.mxu0 0.0
      %332 = vmatpush2.msra.mxu0 0.0
      %333 = vmatprep.subr.mxu0 0.0
      %334 = vmatpush2.msra.mxu0 0.0
      %335 = vmatprep.subr.mxu0 0.0
      %336 = vmatpush2.msra.mxu0 0.0
      %337 = vmatprep.subr.mxu0 0.0
      %338 = vmatpush2.msra.mxu0 0.0
      %339 = vmatprep.subr.mxu0 0.0
      %340 = vmatpush2.msra.mxu0 0.0
      %341 = vmatprep.subr.mxu0 0.0
      %342 = vmatpush2.msra.mxu0 0.0
      %343 = vmatprep.subr.mxu0 0.0
      %344 = vmatpush2.msra.mxu0 0.0
      %345 = vmatprep.subr.mxu0 0.0
      %346 = vmatpush2.msra.mxu0 0.0
      %347 = vmatprep.subr.mxu0 0.0
      %348 = vmatpush2.msra.mxu0 0.0
      %349 = vmatprep.subr.mxu0 0.0
      %350 = vmatpush2.msra.mxu0 0.0
      %351 = vmatprep.subr.mxu0 0.0
      %352 = vmatpush2.msra.mxu0 0.0
      %353 = vmatprep.subr.mxu0 0.0
      %354 = vmatpush2.msra.mxu0 0.0
      %355 = vmatprep.subr.mxu0 0.0
      %356 = vmatpush2.msra.mxu0 0.0
      %357 = vmatprep.subr.mxu0 0.0
      %358 = vmatpush2.msra.mxu0 0.0
      %359 = vmatprep.subr.mxu0 0.0
      %360 = vmatpush2.msra.mxu0 0.0
      %361 = vmatprep.subr.mxu0 0.0
      %362 = vmatpush2.msra.mxu0 0.0
      %363 = vmatprep.mubr.f32.mxu0 0.0
      %364 = vmatmul.mubr.f32.gmra.mxu0 %v297
      %v365 = vpop.f32.mrf.mxu0
      %v366 = vadd.f32 0.0, %v365
      %v367 = vpop.f32.mrf.mxu0
      %368 = vdwg.mxu0
      %v370 = vsel %vm295, %v275, 0
      %372 = vmatprep.subr.mxu0 0.0
      %373 = vmatpush1.msra.mxu0 0.0
      %374 = vmatprep.subr.mxu0 0.0
      %375 = vmatpush1.msra.mxu0 0.0
      %376 = vmatprep.subr.mxu0 0.0
      %377 = vmatpush1.msra.mxu0 0.0
      %378 = vmatprep.subr.mxu0 0.0
      %379 = vmatpush1.msra.mxu0 0.0
      %380 = vmatprep.subr.mxu0 0.0
      %381 = vmatpush1.msra.mxu0 0.0
      %382 = vmatprep.subr.mxu0 0.0
      %383 = vmatpush1.msra.mxu0 0.0
      %384 = vmatprep.subr.mxu0 0.0
      %385 = vmatpush1.msra.mxu0 0.0
      %386 = vmatprep.subr.mxu0 0.0
      %387 = vmatpush1.msra.mxu0 0.0
      %388 = vmatprep.subr.mxu0 0.0
      %389 = vmatpush1.msra.mxu0 %v283
      %390 = vmatprep.subr.mxu0 0.0
      %391 = vmatpush1.msra.mxu0 %v282
      %392 = vmatprep.subr.mxu0 0.0
      %393 = vmatpush1.msra.mxu0 %v281
      %394 = vmatprep.subr.mxu0 0.0
      %395 = vmatpush1.msra.mxu0 %v280
      %396 = vmatprep.subr.mxu0 0.0
      %397 = vmatpush1.msra.mxu0 %v279
      %398 = vmatprep.subr.mxu0 0.0
      %399 = vmatpush1.msra.mxu0 %v278
      %400 = vmatprep.subr.mxu0 0.0
      %401 = vmatpush1.msra.mxu0 %v277
      %402 = vmatprep.subr.mxu0 0.0
      %403 = vmatpush1.msra.mxu0 %v276
      %404 = vmatprep.subr.mxu0 0.0
      %405 = vmatpush2.msra.mxu0 0.0
      %406 = vmatprep.subr.mxu0 0.0
      %407 = vmatpush2.msra.mxu0 0.0
      %408 = vmatprep.subr.mxu0 0.0
      %409 = vmatpush2.msra.mxu0 0.0
      %410 = vmatprep.subr.mxu0 0.0
      %411 = vmatpush2.msra.mxu0 0.0
      %412 = vmatprep.subr.mxu0 0.0
      %413 = vmatpush2.msra.mxu0 0.0
      %414 = vmatprep.subr.mxu0 0.0
      %415 = vmatpush2.msra.mxu0 0.0
      %416 = vmatprep.subr.mxu0 0.0
      %417 = vmatpush2.msra.mxu0 0.0
      %418 = vmatprep.subr.mxu0 0.0
      %419 = vmatpush2.msra.mxu0 0.0
      %420 = vmatprep.subr.mxu0 0.0
      %421 = vmatpush2.msra.mxu0 0.0
      %422 = vmatprep.subr.mxu0 0.0
      %423 = vmatpush2.msra.mxu0 0.0
      %424 = vmatprep.subr.mxu0 0.0
      %425 = vmatpush2.msra.mxu0 0.0
      %426 = vmatprep.subr.mxu0 0.0
      %427 = vmatpush2.msra.mxu0 0.0
      %428 = vmatprep.subr.mxu0 0.0
      %429 = vmatpush2.msra.mxu0 0.0
      %430 = vmatprep.subr.mxu0 0.0
      %431 = vmatpush2.msra.mxu0 0.0
      %432 = vmatprep.subr.mxu0 0.0
      %433 = vmatpush2.msra.mxu0 0.0
      %434 = vmatprep.subr.mxu0 0.0
      %435 = vmatpush2.msra.mxu0 0.0
      %436 = vmatprep.mubr.f32.mxu0 0.0
      %437 = vmatmul.mubr.f32.gmra.mxu0 %v370
      %v438 = vpop.f32.mrf.mxu0
      %v439 = vadd.f32 %v366, %v438
      %v440 = vpop.f32.mrf.mxu0
      %441 = vdwg.mxu0
      %s442 = scalar_lea.vmem %s271, 2
      %v443 = vld [vmem:[%s442] ss:$2 sm:$0x7f]
      %s444 = scalar_lea.vmem %s1, 128
      %v445 = vld [vmem:[%s444] sm:$0xff]
      %v446 = vld [vmem:[%s444 + $0x8] sm:$0xff]
      %v447 = vld [vmem:[%s444 + $0x10] sm:$0xff]
      %v448 = vld [vmem:[%s444 + $0x18] sm:$0xff]
      %v449 = vld [vmem:[%s444 + $0x20] sm:$0xff]
      %v450 = vld [vmem:[%s444 + $0x28] sm:$0xff]
      %v451 = vld [vmem:[%s444 + $0x30] sm:$0xff]
      %v452 = vld [vmem:[%s444 + $0x38] sm:$0xff]
      %v454 = vsel %vm295, %v443, 0
      %456 = vmatprep.subr.mxu0 0.0
      %457 = vmatpush1.msra.mxu0 0.0
      %458 = vmatprep.subr.mxu0 0.0
      %459 = vmatpush1.msra.mxu0 0.0
      %460 = vmatprep.subr.mxu0 0.0
      %461 = vmatpush1.msra.mxu0 0.0
      %462 = vmatprep.subr.mxu0 0.0
      %463 = vmatpush1.msra.mxu0 0.0
      %464 = vmatprep.subr.mxu0 0.0
      %465 = vmatpush1.msra.mxu0 0.0
      %466 = vmatprep.subr.mxu0 0.0
      %467 = vmatpush1.msra.mxu0 0.0
      %468 = vmatprep.subr.mxu0 0.0
      %469 = vmatpush1.msra.mxu0 0.0
      %470 = vmatprep.subr.mxu0 0.0
      %471 = vmatpush1.msra.mxu0 0.0
      %472 = vmatprep.subr.mxu0 0.0
      %473 = vmatpush1.msra.mxu0 %v452
      %474 = vmatprep.subr.mxu0 0.0
      %475 = vmatpush1.msra.mxu0 %v451
      %476 = vmatprep.subr.mxu0 0.0
      %477 = vmatpush1.msra.mxu0 %v450
      %478 = vmatprep.subr.mxu0 0.0
      %479 = vmatpush1.msra.mxu0 %v449
      %480 = vmatprep.subr.mxu0 0.0
      %481 = vmatpush1.msra.mxu0 %v448
      %482 = vmatprep.subr.mxu0 0.0
      %483 = vmatpush1.msra.mxu0 %v447
      %484 = vmatprep.subr.mxu0 0.0
      %485 = vmatpush1.msra.mxu0 %v446
      %486 = vmatprep.subr.mxu0 0.0
      %487 = vmatpush1.msra.mxu0 %v445
      %488 = vmatprep.subr.mxu0 0.0
      %489 = vmatpush2.msra.mxu0 0.0
      %490 = vmatprep.subr.mxu0 0.0
      %491 = vmatpush2.msra.mxu0 0.0
      %492 = vmatprep.subr.mxu0 0.0
      %493 = vmatpush2.msra.mxu0 0.0
      %494 = vmatprep.subr.mxu0 0.0
      %495 = vmatpush2.msra.mxu0 0.0
      %496 = vmatprep.subr.mxu0 0.0
      %497 = vmatpush2.msra.mxu0 0.0
      %498 = vmatprep.subr.mxu0 0.0
      %499 = vmatpush2.msra.mxu0 0.0
      %500 = vmatprep.subr.mxu0 0.0
      %501 = vmatpush2.msra.mxu0 0.0
      %502 = vmatprep.subr.mxu0 0.0
      %503 = vmatpush2.msra.mxu0 0.0
      %504 = vmatprep.subr.mxu0 0.0
      %505 = vmatpush2.msra.mxu0 0.0
      %506 = vmatprep.subr.mxu0 0.0
      %507 = vmatpush2.msra.mxu0 0.0
      %508 = vmatprep.subr.mxu0 0.0
      %509 = vmatpush2.msra.mxu0 0.0
      %510 = vmatprep.subr.mxu0 0.0
      %511 = vmatpush2.msra.mxu0 0.0
      %512 = vmatprep.subr.mxu0 0.0
      %513 = vmatpush2.msra.mxu0 0.0
      %514 = vmatprep.subr.mxu0 0.0
      %515 = vmatpush2.msra.mxu0 0.0
      %516 = vmatprep.subr.mxu0 0.0
      %517 = vmatpush2.msra.mxu0 0.0
      %518 = vmatprep.subr.mxu0 0.0
      %519 = vmatpush2.msra.mxu0 0.0
      %520 = vmatprep.mubr.f32.mxu0 0.0
      %521 = vmatmul.mubr.f32.gmra.mxu0 %v454
      %v522 = vpop.f32.mrf.mxu0
      %v523 = vadd.f32 0.0, %v522
      %v524 = vpop.f32.mrf.mxu0
      %525 = vdwg.mxu0
      %v526 = vadd.f32 %v439, %v523
      %v527 = vld [vmem:[%s2] sm:$0x1]
      %v529 = vlaneseq
      %v530 = vshrl.u32 %v529, 7
      %v531 = vsub.s32 0, %v530
      %v532 = vrot.slane %v527, %v531
      %v534 = vadd.f32 %v526, %v532
      %vm535 = vcmask 456704
      %536 = vst.msk [vmem:[#allocation2] sm:$0x7f] %vm535, %v534
      %v537 = vld [vmem:[#allocation2] ss:$2 sm:$0x7]
      %v538 = vld [vmem:[%s3] sm:$0xff]
      %v539 = vld [vmem:[%s3 + $0x8] sm:$0xff]
      %v540 = vld [vmem:[%s3 + $0x10] sm:$0xff]
      %v541 = vld [vmem:[%s3 + $0x18] sm:$0xff]
      %v542 = vld [vmem:[%s3 + $0x20] sm:$0xff]
      %v543 = vld [vmem:[%s3 + $0x28] sm:$0xff]
      %v544 = vld [vmem:[%s3 + $0x30] sm:$0xff]
      %s545 = scalar_lea.vmem [#allocation2], 1
      %v546 = vld [vmem:[%s545] ss:$2 sm:$0x7]
      %s547 = scalar_lea.vmem %s3, 56
      %v548 = vld [vmem:[%s547] sm:$0xff]
      %v549 = vld [vmem:[%s547 + $0x8] sm:$0xff]
      %v550 = vld [vmem:[%s547 + $0x10] sm:$0xff]
      %v551 = vld [vmem:[%s547 + $0x18] sm:$0xff]
      %v552 = vld [vmem:[%s547 + $0x20] sm:$0xff]
      %v553 = vld [vmem:[%s547 + $0x28] sm:$0xff]
      %v554 = vld [vmem:[%s547 + $0x30] sm:$0xff]
      %vm555 = vcmask 457728
      %v557 = vsel %vm555, %v546, 0
      %559 = vmatprep.subr.mxu0 0.0
      %560 = vmatpush1.msra.mxu0 0.0
      %561 = vmatprep.subr.mxu0 0.0
      %562 = vmatpush1.msra.mxu0 0.0
      %563 = vmatprep.subr.mxu0 0.0
      %564 = vmatpush1.msra.mxu0 0.0
      %565 = vmatprep.subr.mxu0 0.0
      %566 = vmatpush1.msra.mxu0 0.0
      %567 = vmatprep.subr.mxu0 0.0
      %568 = vmatpush1.msra.mxu0 0.0
      %569 = vmatprep.subr.mxu0 0.0
      %570 = vmatpush1.msra.mxu0 0.0
      %571 = vmatprep.subr.mxu0 0.0
      %572 = vmatpush1.msra.mxu0 0.0
      %573 = vmatprep.subr.mxu0 0.0
      %574 = vmatpush1.msra.mxu0 0.0
      %575 = vmatprep.subr.mxu0 0.0
      %576 = vmatpush1.msra.mxu0 0.0
      %577 = vmatprep.subr.mxu0 0.0
      %578 = vmatpush1.msra.mxu0 %v554
      %579 = vmatprep.subr.mxu0 0.0
      %580 = vmatpush1.msra.mxu0 %v553
      %581 = vmatprep.subr.mxu0 0.0
      %582 = vmatpush1.msra.mxu0 %v552
      %583 = vmatprep.subr.mxu0 0.0
      %584 = vmatpush1.msra.mxu0 %v551
      %585 = vmatprep.subr.mxu0 0.0
      %586 = vmatpush1.msra.mxu0 %v550
      %587 = vmatprep.subr.mxu0 0.0
      %588 = vmatpush1.msra.mxu0 %v549
      %589 = vmatprep.subr.mxu0 0.0
      %590 = vmatpush1.msra.mxu0 %v548
      %591 = vmatprep.subr.mxu0 0.0
      %592 = vmatpush2.msra.mxu0 0.0
      %593 = vmatprep.subr.mxu0 0.0
      %594 = vmatpush2.msra.mxu0 0.0
      %595 = vmatprep.subr.mxu0 0.0
      %596 = vmatpush2.msra.mxu0 0.0
      %597 = vmatprep.subr.mxu0 0.0
      %598 = vmatpush2.msra.mxu0 0.0
      %599 = vmatprep.subr.mxu0 0.0
      %600 = vmatpush2.msra.mxu0 0.0
      %601 = vmatprep.subr.mxu0 0.0
      %602 = vmatpush2.msra.mxu0 0.0
      %603 = vmatprep.subr.mxu0 0.0
      %604 = vmatpush2.msra.mxu0 0.0
      %605 = vmatprep.subr.mxu0 0.0
      %606 = vmatpush2.msra.mxu0 0.0
      %607 = vmatprep.subr.mxu0 0.0
      %608 = vmatpush2.msra.mxu0 0.0
      %609 = vmatprep.subr.mxu0 0.0
      %610 = vmatpush2.msra.mxu0 0.0
      %611 = vmatprep.subr.mxu0 0.0
      %612 = vmatpush2.msra.mxu0 0.0
      %613 = vmatprep.subr.mxu0 0.0
      %614 = vmatpush2.msra.mxu0 0.0
      %615 = vmatprep.subr.mxu0 0.0
      %616 = vmatpush2.msra.mxu0 0.0
      %617 = vmatprep.subr.mxu0 0.0
      %618 = vmatpush2.msra.mxu0 0.0
      %619 = vmatprep.subr.mxu0 0.0
      %620 = vmatpush2.msra.mxu0 0.0
      %621 = vmatprep.subr.mxu0 0.0
      %622 = vmatpush2.msra.mxu0 0.0
      %623 = vmatprep.mubr.f32.mxu0 0.0
      %624 = vmatmul.mubr.f32.gmra.mxu0 %v557
      %v625 = vpop.f32.mrf.mxu0
      %v626 = vadd.f32 0.0, %v625
      %v627 = vpop.f32.mrf.mxu0
      %628 = vdwg.mxu0
      %v630 = vsel %vm555, %v537, 0
      %632 = vmatprep.subr.mxu0 0.0
      %633 = vmatpush1.msra.mxu0 0.0
      %634 = vmatprep.subr.mxu0 0.0
      %635 = vmatpush1.msra.mxu0 0.0
      %636 = vmatprep.subr.mxu0 0.0
      %637 = vmatpush1.msra.mxu0 0.0
      %638 = vmatprep.subr.mxu0 0.0
      %639 = vmatpush1.msra.mxu0 0.0
      %640 = vmatprep.subr.mxu0 0.0
      %641 = vmatpush1.msra.mxu0 0.0
      %642 = vmatprep.subr.mxu0 0.0
      %643 = vmatpush1.msra.mxu0 0.0
      %644 = vmatprep.subr.mxu0 0.0
      %645 = vmatpush1.msra.mxu0 0.0
      %646 = vmatprep.subr.mxu0 0.0
      %647 = vmatpush1.msra.mxu0 0.0
      %648 = vmatprep.subr.mxu0 0.0
      %649 = vmatpush1.msra.mxu0 0.0
      %650 = vmatprep.subr.mxu0 0.0
      %651 = vmatpush1.msra.mxu0 %v544
      %652 = vmatprep.subr.mxu0 0.0
      %653 = vmatpush1.msra.mxu0 %v543
      %654 = vmatprep.subr.mxu0 0.0
      %655 = vmatpush1.msra.mxu0 %v542
      %656 = vmatprep.subr.mxu0 0.0
      %657 = vmatpush1.msra.mxu0 %v541
      %658 = vmatprep.subr.mxu0 0.0
      %659 = vmatpush1.msra.mxu0 %v540
      %660 = vmatprep.subr.mxu0 0.0
      %661 = vmatpush1.msra.mxu0 %v539
      %662 = vmatprep.subr.mxu0 0.0
      %663 = vmatpush1.msra.mxu0 %v538
      %664 = vmatprep.subr.mxu0 0.0
      %665 = vmatpush2.msra.mxu0 0.0
      %666 = vmatprep.subr.mxu0 0.0
      %667 = vmatpush2.msra.mxu0 0.0
      %668 = vmatprep.subr.mxu0 0.0
      %669 = vmatpush2.msra.mxu0 0.0
      %670 = vmatprep.subr.mxu0 0.0
      %671 = vmatpush2.msra.mxu0 0.0
      %672 = vmatprep.subr.mxu0 0.0
      %673 = vmatpush2.msra.mxu0 0.0
      %674 = vmatprep.subr.mxu0 0.0
      %675 = vmatpush2.msra.mxu0 0.0
      %676 = vmatprep.subr.mxu0 0.0
      %677 = vmatpush2.msra.mxu0 0.0
      %678 = vmatprep.subr.mxu0 0.0
      %679 = vmatpush2.msra.mxu0 0.0
      %680 = vmatprep.subr.mxu0 0.0
      %681 = vmatpush2.msra.mxu0 0.0
      %682 = vmatprep.subr.mxu0 0.0
      %683 = vmatpush2.msra.mxu0 0.0
      %684 = vmatprep.subr.mxu0 0.0
      %685 = vmatpush2.msra.mxu0 0.0
      %686 = vmatprep.subr.mxu0 0.0
      %687 = vmatpush2.msra.mxu0 0.0
      %688 = vmatprep.subr.mxu0 0.0
      %689 = vmatpush2.msra.mxu0 0.0
      %690 = vmatprep.subr.mxu0 0.0
      %691 = vmatpush2.msra.mxu0 0.0
      %692 = vmatprep.subr.mxu0 0.0
      %693 = vmatpush2.msra.mxu0 0.0
      %694 = vmatprep.subr.mxu0 0.0
      %695 = vmatpush2.msra.mxu0 0.0
      %696 = vmatprep.mubr.f32.mxu0 0.0
      %697 = vmatmul.mubr.f32.gmra.mxu0 %v630
      %v698 = vpop.f32.mrf.mxu0
      %v699 = vadd.f32 %v626, %v698
      %v700 = vpop.f32.mrf.mxu0
      %701 = vdwg.mxu0
      %s702 = scalar_lea.vmem [#allocation2], 2
      %v703 = vld [vmem:[%s702] ss:$2 sm:$0x7]
      %s704 = scalar_lea.vmem %s3, 112
      %v705 = vld [vmem:[%s704] sm:$0xff]
      %v706 = vld [vmem:[%s704 + $0x8] sm:$0xff]
      %v707 = vld [vmem:[%s704 + $0x10] sm:$0xff]
      %v708 = vld [vmem:[%s704 + $0x18] sm:$0xff]
      %v709 = vld [vmem:[%s704 + $0x20] sm:$0xff]
      %v710 = vld [vmem:[%s704 + $0x28] sm:$0xff]
      %v711 = vld [vmem:[%s704 + $0x30] sm:$0xff]
      %v713 = vsel %vm555, %v703, 0
      %715 = vmatprep.subr.mxu0 0.0
      %716 = vmatpush1.msra.mxu0 0.0
      %717 = vmatprep.subr.mxu0 0.0
      %718 = vmatpush1.msra.mxu0 0.0
      %719 = vmatprep.subr.mxu0 0.0
      %720 = vmatpush1.msra.mxu0 0.0
      %721 = vmatprep.subr.mxu0 0.0
      %722 = vmatpush1.msra.mxu0 0.0
      %723 = vmatprep.subr.mxu0 0.0
      %724 = vmatpush1.msra.mxu0 0.0
      %725 = vmatprep.subr.mxu0 0.0
      %726 = vmatpush1.msra.mxu0 0.0
      %727 = vmatprep.subr.mxu0 0.0
      %728 = vmatpush1.msra.mxu0 0.0
      %729 = vmatprep.subr.mxu0 0.0
      %730 = vmatpush1.msra.mxu0 0.0
      %731 = vmatprep.subr.mxu0 0.0
      %732 = vmatpush1.msra.mxu0 0.0
      %733 = vmatprep.subr.mxu0 0.0
      %734 = vmatpush1.msra.mxu0 %v711
      %735 = vmatprep.subr.mxu0 0.0
      %736 = vmatpush1.msra.mxu0 %v710
      %737 = vmatprep.subr.mxu0 0.0
      %738 = vmatpush1.msra.mxu0 %v709
      %739 = vmatprep.subr.mxu0 0.0
      %740 = vmatpush1.msra.mxu0 %v708
      %741 = vmatprep.subr.mxu0 0.0
      %742 = vmatpush1.msra.mxu0 %v707
      %743 = vmatprep.subr.mxu0 0.0
      %744 = vmatpush1.msra.mxu0 %v706
      %745 = vmatprep.subr.mxu0 0.0
      %746 = vmatpush1.msra.mxu0 %v705
      %747 = vmatprep.subr.mxu0 0.0
      %748 = vmatpush2.msra.mxu0 0.0
      %749 = vmatprep.subr.mxu0 0.0
      %750 = vmatpush2.msra.mxu0 0.0
      %751 = vmatprep.subr.mxu0 0.0
      %752 = vmatpush2.msra.mxu0 0.0
      %753 = vmatprep.subr.mxu0 0.0
      %754 = vmatpush2.msra.mxu0 0.0
      %755 = vmatprep.subr.mxu0 0.0
      %756 = vmatpush2.msra.mxu0 0.0
      %757 = vmatprep.subr.mxu0 0.0
      %758 = vmatpush2.msra.mxu0 0.0
      %759 = vmatprep.subr.mxu0 0.0
      %760 = vmatpush2.msra.mxu0 0.0
      %761 = vmatprep.subr.mxu0 0.0
      %762 = vmatpush2.msra.mxu0 0.0
      %763 = vmatprep.subr.mxu0 0.0
      %764 = vmatpush2.msra.mxu0 0.0
      %765 = vmatprep.subr.mxu0 0.0
      %766 = vmatpush2.msra.mxu0 0.0
      %767 = vmatprep.subr.mxu0 0.0
      %768 = vmatpush2.msra.mxu0 0.0
      %769 = vmatprep.subr.mxu0 0.0
      %770 = vmatpush2.msra.mxu0 0.0
      %771 = vmatprep.subr.mxu0 0.0
      %772 = vmatpush2.msra.mxu0 0.0
      %773 = vmatprep.subr.mxu0 0.0
      %774 = vmatpush2.msra.mxu0 0.0
      %775 = vmatprep.subr.mxu0 0.0
      %776 = vmatpush2.msra.mxu0 0.0
      %777 = vmatprep.subr.mxu0 0.0
      %778 = vmatpush2.msra.mxu0 0.0
      %779 = vmatprep.mubr.f32.mxu0 0.0
      %780 = vmatmul.mubr.f32.gmra.mxu0 %v713
      %v781 = vpop.f32.mrf.mxu0
      %v782 = vadd.f32 0.0, %v781
      %v783 = vpop.f32.mrf.mxu0
      %784 = vdwg.mxu0
      %v785 = vadd.f32 %v699, %v782
      %v786 = vld [vmem:[%s4] sm:$0x1]
      %v788 = vlaneseq
      %v789 = vshrl.u32 %v788, 7
      %v790 = vsub.s32 0, %v789
      %v791 = vrot.slane %v786, %v790
      %v793 = vadd.f32 %v785, %v791
      %vm794 = vcmask 387072
      %795 = vst.msk [vmem:[#allocation3] sm:$0x7] %vm794, %v793
      %v796 = vld [vmem:[#allocation3] sm:$0x1]
      %v797 = vld [vmem:[%s5] sm:$0xff]
      %v798 = vld [vmem:[%s5 + $0x8] sm:$0xff]
      %v799 = vld [vmem:[%s5 + $0x10] sm:$0xff]
      %v800 = vld [vmem:[%s5 + $0x18] sm:$0xff]
      %v801 = vld [vmem:[%s5 + $0x20] sm:$0xff]
      %v802 = vld [vmem:[%s5 + $0x28] sm:$0xff]
      %v803 = vld [vmem:[#allocation3 + $0x1] sm:$0x1]
      %s804 = scalar_lea.vmem %s5, 48
      %v805 = vld [vmem:[%s804] sm:$0xff]
      %v806 = vld [vmem:[%s804 + $0x8] sm:$0xff]
      %v807 = vld [vmem:[%s804 + $0x10] sm:$0xff]
      %v808 = vld [vmem:[%s804 + $0x18] sm:$0xff]
      %v809 = vld [vmem:[%s804 + $0x20] sm:$0xff]
      %v810 = vld [vmem:[%s804 + $0x28] sm:$0xff]
      %vm811 = vcmask 392192
      %v813 = vsel %vm811, %v803, 0
      %815 = vmatprep.subr.mxu0 0.0
      %816 = vmatpush1.msra.mxu0 0.0
      %817 = vmatprep.subr.mxu0 0.0
      %818 = vmatpush1.msra.mxu0 0.0
      %819 = vmatprep.subr.mxu0 0.0
      %820 = vmatpush1.msra.mxu0 0.0
      %821 = vmatprep.subr.mxu0 0.0
      %822 = vmatpush1.msra.mxu0 0.0
      %823 = vmatprep.subr.mxu0 0.0
      %824 = vmatpush1.msra.mxu0 0.0
      %825 = vmatprep.subr.mxu0 0.0
      %826 = vmatpush1.msra.mxu0 0.0
      %827 = vmatprep.subr.mxu0 0.0
      %828 = vmatpush1.msra.mxu0 0.0
      %829 = vmatprep.subr.mxu0 0.0
      %830 = vmatpush1.msra.mxu0 0.0
      %831 = vmatprep.subr.mxu0 0.0
      %832 = vmatpush1.msra.mxu0 0.0
      %833 = vmatprep.subr.mxu0 0.0
      %834 = vmatpush1.msra.mxu0 0.0
      %835 = vmatprep.subr.mxu0 0.0
      %836 = vmatpush1.msra.mxu0 %v810
      %837 = vmatprep.subr.mxu0 0.0
      %838 = vmatpush1.msra.mxu0 %v809
      %839 = vmatprep.subr.mxu0 0.0
      %840 = vmatpush1.msra.mxu0 %v808
      %841 = vmatprep.subr.mxu0 0.0
      %842 = vmatpush1.msra.mxu0 %v807
      %843 = vmatprep.subr.mxu0 0.0
      %844 = vmatpush1.msra.mxu0 %v806
      %845 = vmatprep.subr.mxu0 0.0
      %846 = vmatpush1.msra.mxu0 %v805
      %847 = vmatprep.subr.mxu0 0.0
      %848 = vmatpush2.msra.mxu0 0.0
      %849 = vmatprep.subr.mxu0 0.0
      %850 = vmatpush2.msra.mxu0 0.0
      %851 = vmatprep.subr.mxu0 0.0
      %852 = vmatpush2.msra.mxu0 0.0
      %853 = vmatprep.subr.mxu0 0.0
      %854 = vmatpush2.msra.mxu0 0.0
      %855 = vmatprep.subr.mxu0 0.0
      %856 = vmatpush2.msra.mxu0 0.0
      %857 = vmatprep.subr.mxu0 0.0
      %858 = vmatpush2.msra.mxu0 0.0
      %859 = vmatprep.subr.mxu0 0.0
      %860 = vmatpush2.msra.mxu0 0.0
      %861 = vmatprep.subr.mxu0 0.0
      %862 = vmatpush2.msra.mxu0 0.0
      %863 = vmatprep.subr.mxu0 0.0
      %864 = vmatpush2.msra.mxu0 0.0
      %865 = vmatprep.subr.mxu0 0.0
      %866 = vmatpush2.msra.mxu0 0.0
      %867 = vmatprep.subr.mxu0 0.0
      %868 = vmatpush2.msra.mxu0 0.0
      %869 = vmatprep.subr.mxu0 0.0
      %870 = vmatpush2.msra.mxu0 0.0
      %871 = vmatprep.subr.mxu0 0.0
      %872 = vmatpush2.msra.mxu0 0.0
      %873 = vmatprep.subr.mxu0 0.0
      %874 = vmatpush2.msra.mxu0 0.0
      %875 = vmatprep.subr.mxu0 0.0
      %876 = vmatpush2.msra.mxu0 0.0
      %877 = vmatprep.subr.mxu0 0.0
      %878 = vmatpush2.msra.mxu0 0.0
      %879 = vmatprep.mubr.f32.mxu0 0.0
      %880 = vmatmul.mubr.f32.gmra.mxu0 %v813
      %v881 = vpop.f32.mrf.mxu0
      %v882 = vadd.f32 0.0, %v881
      %v883 = vpop.f32.mrf.mxu0
      %884 = vdwg.mxu0
      %v886 = vsel %vm811, %v796, 0
      %888 = vmatprep.subr.mxu0 0.0
      %889 = vmatpush1.msra.mxu0 0.0
      %890 = vmatprep.subr.mxu0 0.0
      %891 = vmatpush1.msra.mxu0 0.0
      %892 = vmatprep.subr.mxu0 0.0
      %893 = vmatpush1.msra.mxu0 0.0
      %894 = vmatprep.subr.mxu0 0.0
      %895 = vmatpush1.msra.mxu0 0.0
      %896 = vmatprep.subr.mxu0 0.0
      %897 = vmatpush1.msra.mxu0 0.0
      %898 = vmatprep.subr.mxu0 0.0
      %899 = vmatpush1.msra.mxu0 0.0
      %900 = vmatprep.subr.mxu0 0.0
      %901 = vmatpush1.msra.mxu0 0.0
      %902 = vmatprep.subr.mxu0 0.0
      %903 = vmatpush1.msra.mxu0 0.0
      %904 = vmatprep.subr.mxu0 0.0
      %905 = vmatpush1.msra.mxu0 0.0
      %906 = vmatprep.subr.mxu0 0.0
      %907 = vmatpush1.msra.mxu0 0.0
      %908 = vmatprep.subr.mxu0 0.0
      %909 = vmatpush1.msra.mxu0 %v802
      %910 = vmatprep.subr.mxu0 0.0
      %911 = vmatpush1.msra.mxu0 %v801
      %912 = vmatprep.subr.mxu0 0.0
      %913 = vmatpush1.msra.mxu0 %v800
      %914 = vmatprep.subr.mxu0 0.0
      %915 = vmatpush1.msra.mxu0 %v799
      %916 = vmatprep.subr.mxu0 0.0
      %917 = vmatpush1.msra.mxu0 %v798
      %918 = vmatprep.subr.mxu0 0.0
      %919 = vmatpush1.msra.mxu0 %v797
      %920 = vmatprep.subr.mxu0 0.0
      %921 = vmatpush2.msra.mxu0 0.0
      %922 = vmatprep.subr.mxu0 0.0
      %923 = vmatpush2.msra.mxu0 0.0
      %924 = vmatprep.subr.mxu0 0.0
      %925 = vmatpush2.msra.mxu0 0.0
      %926 = vmatprep.subr.mxu0 0.0
      %927 = vmatpush2.msra.mxu0 0.0
      %928 = vmatprep.subr.mxu0 0.0
      %929 = vmatpush2.msra.mxu0 0.0
      %930 = vmatprep.subr.mxu0 0.0
      %931 = vmatpush2.msra.mxu0 0.0
      %932 = vmatprep.subr.mxu0 0.0
      %933 = vmatpush2.msra.mxu0 0.0
      %934 = vmatprep.subr.mxu0 0.0
      %935 = vmatpush2.msra.mxu0 0.0
      %936 = vmatprep.subr.mxu0 0.0
      %937 = vmatpush2.msra.mxu0 0.0
      %938 = vmatprep.subr.mxu0 0.0
      %939 = vmatpush2.msra.mxu0 0.0
      %940 = vmatprep.subr.mxu0 0.0
      %941 = vmatpush2.msra.mxu0 0.0
      %942 = vmatprep.subr.mxu0 0.0
      %943 = vmatpush2.msra.mxu0 0.0
      %944 = vmatprep.subr.mxu0 0.0
      %945 = vmatpush2.msra.mxu0 0.0
      %946 = vmatprep.subr.mxu0 0.0
      %947 = vmatpush2.msra.mxu0 0.0
      %948 = vmatprep.subr.mxu0 0.0
      %949 = vmatpush2.msra.mxu0 0.0
      %950 = vmatprep.subr.mxu0 0.0
      %951 = vmatpush2.msra.mxu0 0.0
      %952 = vmatprep.mubr.f32.mxu0 0.0
      %953 = vmatmul.mubr.f32.gmra.mxu0 %v886
      %v954 = vpop.f32.mrf.mxu0
      %v955 = vadd.f32 %v882, %v954
      %v956 = vpop.f32.mrf.mxu0
      %957 = vdwg.mxu0
      %v958 = vld [vmem:[#allocation3 + $0x2] sm:$0x1]
      %s959 = scalar_lea.vmem %s5, 96
      %v960 = vld [vmem:[%s959] sm:$0xff]
      %v961 = vld [vmem:[%s959 + $0x8] sm:$0xff]
      %v962 = vld [vmem:[%s959 + $0x10] sm:$0xff]
      %v963 = vld [vmem:[%s959 + $0x18] sm:$0xff]
      %v964 = vld [vmem:[%s959 + $0x20] sm:$0xff]
      %v965 = vld [vmem:[%s959 + $0x28] sm:$0xff]
      %v967 = vsel %vm811, %v958, 0
      %969 = vmatprep.subr.mxu0 0.0
      %970 = vmatpush1.msra.mxu0 0.0
      %971 = vmatprep.subr.mxu0 0.0
      %972 = vmatpush1.msra.mxu0 0.0
      %973 = vmatprep.subr.mxu0 0.0
      %974 = vmatpush1.msra.mxu0 0.0
      %975 = vmatprep.subr.mxu0 0.0
      %976 = vmatpush1.msra.mxu0 0.0
      %977 = vmatprep.subr.mxu0 0.0
      %978 = vmatpush1.msra.mxu0 0.0
      %979 = vmatprep.subr.mxu0 0.0
      %980 = vmatpush1.msra.mxu0 0.0
      %981 = vmatprep.subr.mxu0 0.0
      %982 = vmatpush1.msra.mxu0 0.0
      %983 = vmatprep.subr.mxu0 0.0
      %984 = vmatpush1.msra.mxu0 0.0
      %985 = vmatprep.subr.mxu0 0.0
      %986 = vmatpush1.msra.mxu0 0.0
      %987 = vmatprep.subr.mxu0 0.0
      %988 = vmatpush1.msra.mxu0 0.0
      %989 = vmatprep.subr.mxu0 0.0
      %990 = vmatpush1.msra.mxu0 %v965
      %991 = vmatprep.subr.mxu0 0.0
      %992 = vmatpush1.msra.mxu0 %v964
      %993 = vmatprep.subr.mxu0 0.0
      %994 = vmatpush1.msra.mxu0 %v963
      %995 = vmatprep.subr.mxu0 0.0
      %996 = vmatpush1.msra.mxu0 %v962
      %997 = vmatprep.subr.mxu0 0.0
      %998 = vmatpush1.msra.mxu0 %v961
      %999 = vmatprep.subr.mxu0 0.0
      %1000 = vmatpush1.msra.mxu0 %v960
      %1001 = vmatprep.subr.mxu0 0.0
      %1002 = vmatpush2.msra.mxu0 0.0
      %1003 = vmatprep.subr.mxu0 0.0
      %1004 = vmatpush2.msra.mxu0 0.0
      %1005 = vmatprep.subr.mxu0 0.0
      %1006 = vmatpush2.msra.mxu0 0.0
      %1007 = vmatprep.subr.mxu0 0.0
      %1008 = vmatpush2.msra.mxu0 0.0
      %1009 = vmatprep.subr.mxu0 0.0
      %1010 = vmatpush2.msra.mxu0 0.0
      %1011 = vmatprep.subr.mxu0 0.0
      %1012 = vmatpush2.msra.mxu0 0.0
      %1013 = vmatprep.subr.mxu0 0.0
      %1014 = vmatpush2.msra.mxu0 0.0
      %1015 = vmatprep.subr.mxu0 0.0
      %1016 = vmatpush2.msra.mxu0 0.0
      %1017 = vmatprep.subr.mxu0 0.0
      %1018 = vmatpush2.msra.mxu0 0.0
      %1019 = vmatprep.subr.mxu0 0.0
      %1020 = vmatpush2.msra.mxu0 0.0
      %1021 = vmatprep.subr.mxu0 0.0
      %1022 = vmatpush2.msra.mxu0 0.0
      %1023 = vmatprep.subr.mxu0 0.0
      %1024 = vmatpush2.msra.mxu0 0.0
      %1025 = vmatprep.subr.mxu0 0.0
      %1026 = vmatpush2.msra.mxu0 0.0
      %1027 = vmatprep.subr.mxu0 0.0
      %1028 = vmatpush2.msra.mxu0 0.0
      %1029 = vmatprep.subr.mxu0 0.0
      %1030 = vmatpush2.msra.mxu0 0.0
      %1031 = vmatprep.subr.mxu0 0.0
      %1032 = vmatpush2.msra.mxu0 0.0
      %1033 = vmatprep.mubr.f32.mxu0 0.0
      %1034 = vmatmul.mubr.f32.gmra.mxu0 %v967
      %v1035 = vpop.f32.mrf.mxu0
      %v1036 = vadd.f32 0.0, %v1035
      %v1037 = vpop.f32.mrf.mxu0
      %1038 = vdwg.mxu0
      %v1039 = vadd.f32 %v955, %v1036
      %v1040 = vld [vmem:[%s6] sm:$0x1]
      %v1041 = vadd.f32 %v1039, %v1040
      %1042 = vst [vmem:[%s274] sm:$0x1] %v1041
      %p1043 = scmp.lt.s32.totalorder %s18, 1
      %s1044 = scalar_select %p1043, %s18, 1
      %s1045 = scalar_lea.vmem %s7, %s1044
      // Predicated region
      $region49: #{encoder_forward.1} parent=47 // pred_check
        %p1046 = pneg %p188
      $region50: #{encoder_forward.1} parent=47 // pred_check_branch
        %1048 = sbr.rel (%p1046) target = $region52
      $region51: #{encoder_forward.1} parent=47 // pred_region
        _
      $region52: #{encoder_forward.1} parent=47 // pred_fallthru
        _
    $region48: #{encoder_forward.1} parent=5 // pred_fallthru
      _
    %p1049 = scmp.le.s32.totalorder 2, %s13
    // Predicated region
    $region53: #{encoder_forward.1} parent=5 // pred_check
      %p1050 = pneg %p1049
    $region54: #{encoder_forward.1} parent=5 // pred_check_branch
      %1052 = sbr.rel (%p1050) target = $region56
    $region55: #{encoder_forward.1} parent=5 // pred_region
      %s1053 = ssub.s32 %s13, 2
      // Predicated region
      $region57: #{encoder_forward.1} parent=55 // pred_check
        %p1054 = pneg %p194
      $region58: #{encoder_forward.1} parent=55 // pred_check_branch
        %1056 = sbr.rel (%p1054) target = $region60
      $region59: #{encoder_forward.1} parent=55 // pred_region
        %p1057 = scmp.lt.s32.totalorder %s19, 1
        %s1058 = scalar_select %p1057, %s19, 1
        %s1059 = scalar_lea.vmem %s7, %s1058
      $region60: #{encoder_forward.1} parent=55 // pred_fallthru
        _
    $region56: #{encoder_forward.1} parent=5 // pred_fallthru
      _
  $region6: #{encoder_forward.1} parent=0 // loop_footer
    %s17 = sadd.s32 1, %s13
  $region7: #{encoder_forward.1} parent=0 // loop_footer_branch
    %12 = sbr.rel target = $region3
  $region8: #{encoder_forward.1} parent=0 // loop_exit
    _

</llo_original>
